<compile_context>
chip_gen: v7x
topology: tpu7x:2x2x1
jax: 0.10.0
libtpu: 0.0.40
codegen_flags: <defaults>
</compile_context>

<pallas_src>
import jax
import jax.numpy as jnp
from jax.experimental import pallas as pl
from jax.experimental.pallas import tpu as pltpu


# ------------------------------ kernels -------------------------------------

def _ae_fused_kernel(x_ref, w1_ref, b1_ref, w23_ref, b23_ref, w4_ref, b4_ref,
                     o_ref):
    """encoder L1 -> ReLU -> [encoder L2 @ decoder L1 fused] -> ReLU -> decoder L2."""
    x = x_ref[...]
    h = jnp.dot(x, w1_ref[...], preferred_element_type=jnp.float32) + b1_ref[...]
    h = jnp.maximum(h, 0.0)
    h2 = jnp.dot(h.astype(w23_ref.dtype), w23_ref[...],
                 preferred_element_type=jnp.float32) + b23_ref[...]
    h2 = jnp.maximum(h2, 0.0)
    y = jnp.dot(h2.astype(w4_ref.dtype), w4_ref[...],
                preferred_element_type=jnp.float32) + b4_ref[...]
    o_ref[...] = y.astype(o_ref.dtype)


def _ae_unfused_kernel(x_ref, w1_ref, b1_ref, w2_ref, b2_ref, w3_ref, b3_ref,
                       w4_ref, b4_ref, o_ref):
    """Same network with the two thin d_model matmuls kept separate (large d_hid)."""
    x = x_ref[...]
    h = jnp.dot(x, w1_ref[...], preferred_element_type=jnp.float32) + b1_ref[...]
    h = jnp.maximum(h, 0.0)
    z = jnp.dot(h.astype(w2_ref.dtype), w2_ref[...],
                preferred_element_type=jnp.float32) + b2_ref[...]
    h2 = jnp.dot(z.astype(w3_ref.dtype), w3_ref[...],
                 preferred_element_type=jnp.float32) + b3_ref[...]
    h2 = jnp.maximum(h2, 0.0)
    y = jnp.dot(h2.astype(w4_ref.dtype), w4_ref[...],
                preferred_element_type=jnp.float32) + b4_ref[...]
    o_ref[...] = y.astype(o_ref.dtype)


# --------------------------- chip / feature probes ---------------------------

def _chip_info():
    """(vmem_capacity_bytes, tensorcores_per_chip, mxu_n) with safe fallbacks."""
    vmem_cap = 128 << 20
    try:
        info = pltpu.get_tpu_info()
        vmem_cap = int(getattr(info, "vmem_capacity_bytes", vmem_cap))
    except Exception:
        pass
    kind = ""
    try:
        kind = jax.devices()[0].device_kind.lower()
    except Exception:
        pass
    # v5e/v6e (and v2/v3) have a single TensorCore; v4/v5p/v7x are megacore.
    single_tc = any(t in kind for t in ("v2", "v3", "v5 lite", "v5e", "v6 lite", "v6e"))
    num_tc = 1 if single_tc else 2
    # MXU N: 128 on v2-v5, 256 on v6e/v7x.
    small_mxu = any(t in kind for t in ("v2", "v3", "v4", "v5"))
    mxu_n = 128 if small_mxu else 256
    return vmem_cap, num_tc, mxu_n


_BUFFERED1 = {"ok": None}


def _probe_buffered_one():
    """Check ONCE (outside jit) whether this build accepts pipeline_mode=pl.Buffered(1)
    on a constant-index pallas_call input.  Falls back to default double buffering."""
    if _BUFFERED1["ok"] is None:
        try:
            def k(a_ref, o_ref):
                o_ref[...] = a_ref[...] + 1.0

            out = pl.pallas_call(
                k,
                out_shape=jax.ShapeDtypeStruct((16, 128), jnp.float32),
                grid=(2,),
                in_specs=[pl.BlockSpec((8, 128), lambda i: (0, 0),
                                       pipeline_mode=pl.Buffered(1))],
                out_specs=pl.BlockSpec((8, 128), lambda i: (i, 0)),
            )(jnp.zeros((8, 128), jnp.float32))
            jax.block_until_ready(out)
            _BUFFERED1["ok"] = True
        except Exception:
            _BUFFERED1["ok"] = False
    return _BUFFERED1["ok"]


# ------------------------------ tiling helpers -------------------------------

def _round_up(n, m):
    return ((n + m - 1) // m) * m


def _choose_batch_tile(B, d_input, d_hid, io_itemsize, num_tc, stream_budget):
    """Row tile for the streamed x/out blocks.

    Sized by BYTES (~2 MiB per x buffer so the ~0.35us/grid-step overhead
    amortizes even when d_input is narrow), capped by the VMEM left after the
    resident weights, and -- on megacore chips only -- capped so the grid has
    >=4 steps (>=2 per TensorCore) whenever the batch allows it."""
    align = 16 if io_itemsize <= 2 else 8        # bf16 packs two rows/sublane
    B_al = _round_up(max(B, 1), align)

    # Scoped-VMEM cost of one batch row:
    #   x + out tiles, double-buffered, io dtype  -> 2 * 2 * d_input * itemsize
    #   f32 activations (h, h2) + f32 result      -> (2*d_hid + d_input) * 4
    per_row = 4 * d_input * io_itemsize + (2 * d_hid + d_input) * 4
    vmem_cap_rows = max(align, (stream_budget // per_row) // align * align)

    target_rows = (2 << 20) // max(1, d_input * io_itemsize)   # ~2 MiB x buffer
    tm = _round_up(min(max(target_rows, align), 2048), align)

    tm = min(tm, vmem_cap_rows)
    if num_tc >= 2:
        # Megacore: keep >=4 grid steps so both cores stay busy and each
        # pipelines >=2 tiles (prefetch/writeback overlap).
        tm = min(tm, max(align, _round_up(pl.cdiv(B_al, 4), align)))
    tm = max(align, min(tm, B_al))
    return tm


# ------------------------------ parameter prep -------------------------------

def prepare_params(params, *, encoder_final_activation=None, fuse_threshold=None):
    """One-time parameter prep.  Run OUTSIDE jit (hoists the w2@w3 product so it
    is not re-materialized in HBM on every forward call).

    When the encoder's final activation is identity (the module's init() default)
    and d_hid is small relative to the MXU width, the two middle linears
    (encoder layer 2, decoder layer 1) are algebraically fused:
        w23 = w2 @ w3,  b23 = b2 @ w3 + b3      (exact up to fp reassociation)
    For large d_hid the fusion is a 4-8x MXU pessimization, so the thin d_model
    matmuls are kept and executed inside the kernel instead."""
    _probe_buffered_one()   # cache Buffered(1) support while we are outside jit

    w1, b1, w2, b2, w3, b3, w4, b4 = (
        params["w1"], params["b1"], params["w2"], params["b2"],
        params["w3"], params["b3"], params["w4"], params["b4"],
    )
    d_hid = w1.shape[1]
    if fuse_threshold is None:
        _, _, mxu_n = _chip_info()
        fuse_threshold = 2 * mxu_n           # 512 on v6e/v7x, 256 on v5e
    fuse = (encoder_final_activation is None) and (d_hid <= fuse_threshold)
    if fuse:
        f32 = jnp.float32
        w23 = (w2.astype(f32) @ w3.astype(f32)).astype(w2.dtype)
        b23 = (b2.astype(f32) @ w3.astype(f32) + b3.astype(f32)).astype(b3.dtype)
        return (w1, b1, w23, b23, w4, b4)
    return (w1, b1, w2, b2, w3, b3, w4, b4)


# --------------------------------- forward -----------------------------------

def adapter_autoencoder(x, weights):
    """x: [B, d_input].  weights: tuple from prepare_params (len 6 fused / 8 unfused)."""
    B, d_input = x.shape
    dtype = x.dtype
    io_itemsize = jnp.dtype(dtype).itemsize
    fused = (len(weights) == 6)
    kernel = _ae_fused_kernel if fused else _ae_unfused_kernel
    d_hid = weights[0].shape[1]

    vmem_cap, num_tc, _ = _chip_info()
    use_b1 = _BUFFERED1["ok"] is True        # safe default: double-buffered

    weight_bytes = sum(int(a.size) * jnp.dtype(a.dtype).itemsize for a in weights)
    resident_copies = 1 if use_b1 else 2
    weight_vmem = weight_bytes * resident_copies
    # TODO(synk): if weight_vmem alone approaches vmem_cap (huge d_hid on v7x's
    # 64 MiB), this resident-weight design needs a K-tiled weight variant.
    stream_budget = max(2 << 20, int(0.8 * vmem_cap) - weight_vmem)
    tm = _choose_batch_tile(B, d_input, d_hid, io_itemsize, num_tc, stream_budget)

    grid = pl.cdiv(B, tm)
    B_pad = grid * tm
    x_pad = x if B_pad == B else jnp.pad(x, ((0, B_pad - B), (0, 0)))

    def resident_spec(arr):
        # Constant index_map => fetched once and stays resident in VMEM.
        # Buffered(1) skips the pointless second buffer (halves weight VMEM).
        if use_b1:
            return pl.BlockSpec(arr.shape, lambda i: (0,) * arr.ndim,
                                pipeline_mode=pl.Buffered(1))
        return pl.BlockSpec(arr.shape, lambda i: (0,) * arr.ndim)

    # TODO(synk): for d_input < 128 the output stores are lane-masked (vst.msk);
    # a lane-dense output slab (fold 128//d_input rows per lane row wrapper-side)
    # would speed the store path, at the cost of a reshape on both ends.
    in_specs = [pl.BlockSpec((tm, d_input), lambda i: (i, 0))]
    in_specs += [resident_spec(a) for a in weights]
    out_spec = pl.BlockSpec((tm, d_input), lambda i: (i, 0))

    # Scoped-VMEM estimate: resident weights + double-buffered x/out tiles
    # + f32 activation temporaries + slack for compiler temps.
    stream_bytes = tm * (4 * d_input * io_itemsize + (2 * d_hid + d_input) * 4)
    vmem_need = weight_vmem + stream_bytes + (4 << 20)
    vmem_limit = None
    if vmem_need > (32 << 20):                      # above the scoped default
        vmem_limit = min(int(vmem_need * 1.2), int(0.9 * vmem_cap))

    if fused:
        flops = 2 * B_pad * (d_input * d_hid + d_hid * d_hid + d_hid * d_input)
    else:
        d_model = weights[2].shape[1]
        flops = 2 * B_pad * (d_input * d_hid + 2 * d_hid * d_model + d_hid * d_input)
    bytes_accessed = 2 * B_pad * d_input * io_itemsize + weight_bytes
    cost = pl.CostEstimate(flops=flops, transcendentals=0,
                           bytes_accessed=bytes_accessed)

    out = pl.pallas_call(
        kernel,
        out_shape=jax.ShapeDtypeStruct((B_pad, d_input), dtype),
        grid_spec=pltpu.PrefetchScalarGridSpec(
            num_scalar_prefetch=0,
            grid=(grid,),
            in_specs=in_specs,
            out_specs=out_spec,
        ),
        compiler_params=pltpu.CompilerParams(
            dimension_semantics=("parallel",),
            vmem_limit_bytes=vmem_limit,
        ),
        cost_estimate=cost,
    )(x_pad, *weights)

    return out[:B] if B_pad != B else out


# ----------------------------- reference & init ------------------------------

def init_params(key, d_input, d_model, d_hid):
    """Deterministic PyTorch-Linear-style init (uniform(-1/sqrt(fan_in), +))."""
    def linear(key, fan_in, fan_out):
        kw, kb = jax.random.split(key)
        bound = 1.0 / (fan_in ** 0.5)
        w = jax.random.uniform(kw, (fan_in, fan_out), jnp.float32, -bound, bound)
        b = jax.random.uniform(kb, (1, fan_out), jnp.float32, -bound, bound)
        return w, b

    k1, k2, k3, k4 = jax.random.split(key, 4)
    w1, b1 = linear(k1, d_input, d_hid)   # encoder layer 1
    w2, b2 = linear(k2, d_hid, d_model)   # encoder layer 2
    w3, b3 = linear(k3, d_model, d_hid)   # decoder layer 1
    w4, b4 = linear(k4, d_hid, d_input)   # decoder layer 2
    return dict(w1=w1, b1=b1, w2=w2, b2=b2, w3=w3, b3=b3, w4=w4, b4=b4)


def reference_forward(x, p):
    """Unfused JAX reference matching the PyTorch module."""
    h = jnp.maximum(x @ p["w1"] + p["b1"], 0.0)
    z = h @ p["w2"] + p["b2"]
    h2 = jnp.maximum(z @ p["w3"] + p["b3"], 0.0)
    return h2 @ p["w4"] + p["b4"]


if __name__ == "__main__":
    key = jax.random.PRNGKey(0)
    k_x, k_p = jax.random.split(key)

    # Small shapes; B=19 exercises the batch-padding path.
    B, d_input, d_model, d_hid = 19, 32, 8, 64
    x = jax.random.normal(k_x, (B, d_input), jnp.float32)
    params = init_params(k_p, d_input, d_model, d_hid)
    ref = reference_forward(x, params)

    fn = jax.jit(adapter_autoencoder)

    # f32, fused-middle path (d_hid small, encoder final activation = None).
    prep = prepare_params(params)
    out = jax.block_until_ready(fn(x, prep))
    assert out.shape == (B, d_input)
    assert jnp.allclose(out, ref, atol=1e-4, rtol=1e-4), "f32 fused mismatch vs reference"

    # f32, unfused path (the variant used for large d_hid) -- different kernel.
    prep_u = prepare_params(params, fuse_threshold=0)
    out_u = jax.block_until_ready(fn(x, prep_u))
    assert jnp.allclose(out_u, ref, atol=1e-4, rtol=1e-4), "f32 unfused mismatch vs reference"

    # bf16 I/O + weights: halves HBM traffic on this bandwidth-bound kernel;
    # MXU still accumulates in f32 via preferred_element_type.
    x_bf = x.astype(jnp.bfloat16)
    p_bf = {k: v.astype(jnp.bfloat16) for k, v in params.items()}
    out_bf = jax.block_until_ready(fn(x_bf, prepare_params(p_bf)))
    assert out_bf.dtype == jnp.bfloat16
    assert jnp.allclose(out_bf.astype(jnp.float32), ref, atol=1e-1, rtol=1e-1), \
        "bf16 mismatch vs f32 reference"

    print("KERNEL_OK")
</pallas_src>

<mosaic_0001>
module attributes {stable_mosaic.version = 11 : i64} {
  func.func @k(%arg0: i32, %arg1: memref<8x128xf32, #tpu.memory_space<vmem>>, %arg2: memref<8x128xf32, #tpu.memory_space<vmem>>) attributes {dimension_semantics = [#tpu.dimension_semantics<arbitrary>], iteration_bounds = array<i64: 2>, scalar_prefetch = 0 : i64, scratch_operands = 0 : i64, tpu.core_type = #tpu.core_type<tc>, window_params = [{pipeline_mode = #tpu.pipeline_mode<synchronous>, transform_indices = @transform_0, window_bounds = array<i64: 8, 128>}, {transform_indices = @transform_1, window_bounds = array<i64: 8, 128>}]} {
    %c0 = arith.constant 0 : index
    %c0_0 = arith.constant 0 : index
    %0 = vector.load %arg1[%c0, %c0_0] : memref<8x128xf32, #tpu.memory_space<vmem>>, vector<8x128xf32>
    %cst = arith.constant 1.000000e+00 : f32
    %1 = vector.broadcast %cst : f32 to vector<8x128xf32>
    %2 = arith.addf %0, %1 : vector<8x128xf32>
    %c0_1 = arith.constant 0 : index
    %c0_2 = arith.constant 0 : index
    %3 = vector.load %arg2[%c0_1, %c0_2] : memref<8x128xf32, #tpu.memory_space<vmem>>, vector<8x128xf32>
    tpu.vector_store %arg2[%c0_1, %c0_2], %2 {strides = array<i32>} : memref<8x128xf32, #tpu.memory_space<vmem>>, vector<8x128xf32>,
    return
  }
  func.func @transform_0(%arg0: i32) -> (i32, i32) {
    %c0_i32 = arith.constant 0 : i32
    %c0_i32_0 = arith.constant 0 : i32
    %c0_i32_1 = arith.constant 0 : i32
    return %c0_i32, %c0_i32_0 : i32, i32
  }
  func.func @transform_1(%arg0: i32) -> (i32, i32) {
    %c0_i32 = arith.constant 0 : i32
    %c0_i32_0 = arith.constant 0 : i32
    return %arg0, %c0_i32 : i32, i32
  }
}

module attributes {stable_mosaic.version = 11 : i64} {
  func.func @_ae_fused_kernel(%arg0: i32, %arg1: memref<8x32xf32, #tpu.memory_space<vmem>>, %arg2: memref<32x64xf32, #tpu.memory_space<vmem>>, %arg3: memref<1x64xf32, #tpu.memory_space<vmem>>, %arg4: memref<64x64xf32, #tpu.memory_space<vmem>>, %arg5: memref<1x64xf32, #tpu.memory_space<vmem>>, %arg6: memref<64x32xf32, #tpu.memory_space<vmem>>, %arg7: memref<1x32xf32, #tpu.memory_space<vmem>>, %arg8: memref<8x32xf32, #tpu.memory_space<vmem>>) attributes {dimension_semantics = [#tpu.dimension_semantics<parallel>], iteration_bounds = array<i64: 3>, scalar_prefetch = 0 : i64, scratch_operands = 0 : i64, tpu.core_type = #tpu.core_type<tc>, window_params = [{transform_indices = @transform_0, window_bounds = array<i64: 8, 32>}, {pipeline_mode = #tpu.pipeline_mode<synchronous>, transform_indices = @transform_1, window_bounds = array<i64: 32, 64>}, {pipeline_mode = #tpu.pipeline_mode<synchronous>, transform_indices = @transform_2, window_bounds = array<i64: 1, 64>}, {pipeline_mode = #tpu.pipeline_mode<synchronous>, transform_indices = @transform_3, window_bounds = array<i64: 64, 64>}, {pipeline_mode = #tpu.pipeline_mode<synchronous>, transform_indices = @transform_4, window_bounds = array<i64: 1, 64>}, {pipeline_mode = #tpu.pipeline_mode<synchronous>, transform_indices = @transform_5, window_bounds = array<i64: 64, 32>}, {pipeline_mode = #tpu.pipeline_mode<synchronous>, transform_indices = @transform_6, window_bounds = array<i64: 1, 32>}, {transform_indices = @transform_7, window_bounds = array<i64: 8, 32>}]} {
    %c0 = arith.constant 0 : index
    %c0_0 = arith.constant 0 : index
    %0 = vector.load %arg1[%c0, %c0_0] : memref<8x32xf32, #tpu.memory_space<vmem>>, vector<8x32xf32>
    %c0_1 = arith.constant 0 : index
    %c0_2 = arith.constant 0 : index
    %1 = vector.load %arg2[%c0_1, %c0_2] : memref<32x64xf32, #tpu.memory_space<vmem>>, vector<32x64xf32>
    %cst = arith.constant dense<0.000000e+00> : vector<8x64xf32>
    %2 = tpu.matmul %0, %1, %cst {dimension_numbers = #tpu.dot_dimension_numbers<[1], [0], [0], [1], [0, 0, 1, 1], [], []>} : vector<8x32xf32>, vector<32x64xf32>, vector<8x64xf32> -> vector<8x64xf32>
    %c0_3 = arith.constant 0 : index
    %c0_4 = arith.constant 0 : index
    %3 = vector.load %arg3[%c0_3, %c0_4] : memref<1x64xf32, #tpu.memory_space<vmem>>, vector<1x64xf32>
    %4 = vector.broadcast %3 : vector<1x64xf32> to vector<8x64xf32>
    %5 = arith.addf %2, %4 : vector<8x64xf32>
    %cst_5 = arith.constant 0.000000e+00 : f32
    %6 = vector.broadcast %cst_5 : f32 to vector<8x64xf32>
    %7 = arith.maximumf %5, %6 : vector<8x64xf32>
    %c0_6 = arith.constant 0 : index
    %c0_7 = arith.constant 0 : index
    %8 = vector.load %arg4[%c0_6, %c0_7] : memref<64x64xf32, #tpu.memory_space<vmem>>, vector<64x64xf32>
    %cst_8 = arith.constant dense<0.000000e+00> : vector<8x64xf32>
    %9 = tpu.matmul %7, %8, %cst_8 {dimension_numbers = #tpu.dot_dimension_numbers<[1], [0], [0], [1], [0, 0, 1, 1], [], []>} : vector<8x64xf32>, vector<64x64xf32>, vector<8x64xf32> -> vector<8x64xf32>
    %c0_9 = arith.constant 0 : index
    %c0_10 = arith.constant 0 : index
    %10 = vector.load %arg5[%c0_9, %c0_10] : memref<1x64xf32, #tpu.memory_space<vmem>>, vector<1x64xf32>
    %11 = vector.broadcast %10 : vector<1x64xf32> to vector<8x64xf32>
    %12 = arith.addf %9, %11 : vector<8x64xf32>
    %cst_11 = arith.constant 0.000000e+00 : f32
    %13 = vector.broadcast %cst_11 : f32 to vector<8x64xf32>
    %14 = arith.maximumf %12, %13 : vector<8x64xf32>
    %c0_12 = arith.constant 0 : index
    %c0_13 = arith.constant 0 : index
    %15 = vector.load %arg6[%c0_12, %c0_13] : memref<64x32xf32, #tpu.memory_space<vmem>>, vector<64x32xf32>
    %cst_14 = arith.constant dense<0.000000e+00> : vector<8x32xf32>
    %16 = tpu.matmul %14, %15, %cst_14 {dimension_numbers = #tpu.dot_dimension_numbers<[1], [0], [0], [1], [0, 0, 1, 1], [], []>} : vector<8x64xf32>, vector<64x32xf32>, vector<8x32xf32> -> vector<8x32xf32>
    %c0_15 = arith.constant 0 : index
    %c0_16 = arith.constant 0 : index
    %17 = vector.load %arg7[%c0_15, %c0_16] : memref<1x32xf32, #tpu.memory_space<vmem>>, vector<1x32xf32>
    %18 = vector.broadcast %17 : vector<1x32xf32> to vector<8x32xf32>
    %19 = arith.addf %16, %18 : vector<8x32xf32>
    %c0_17 = arith.constant 0 : index
    %c0_18 = arith.constant 0 : index
    %20 = vector.load %arg8[%c0_17, %c0_18] : memref<8x32xf32, #tpu.memory_space<vmem>>, vector<8x32xf32>
    tpu.vector_store %arg8[%c0_17, %c0_18], %19 {strides = array<i32>} : memref<8x32xf32, #tpu.memory_space<vmem>>, vector<8x32xf32>,
    return
  }
  func.func @transform_0(%arg0: i32) -> (i32, i32) {
    %c0_i32 = arith.constant 0 : i32
    %c0_i32_0 = arith.constant 0 : i32
    return %arg0, %c0_i32 : i32, i32
  }
  func.func @transform_1(%arg0: i32) -> (i32, i32) {
    %c0_i32 = arith.constant 0 : i32
    %c0_i32_0 = arith.constant 0 : i32
    %c0_i32_1 = arith.constant 0 : i32
    return %c0_i32, %c0_i32_0 : i32, i32
  }
  func.func @transform_2(%arg0: i32) -> (i32, i32) {
    %c0_i32 = arith.constant 0 : i32
    %c0_i32_0 = arith.constant 0 : i32
    %c0_i32_1 = arith.constant 0 : i32
    return %c0_i32, %c0_i32_0 : i32, i32
  }
  func.func @transform_3(%arg0: i32) -> (i32, i32) {
    %c0_i32 = arith.constant 0 : i32
    %c0_i32_0 = arith.constant 0 : i32
    %c0_i32_1 = arith.constant 0 : i32
    return %c0_i32, %c0_i32_0 : i32, i32
  }
  func.func @transform_4(%arg0: i32) -> (i32, i32) {
    %c0_i32 = arith.constant 0 : i32
    %c0_i32_0 = arith.constant 0 : i32
    %c0_i32_1 = arith.constant 0 : i32
    return %c0_i32, %c0_i32_0 : i32, i32
  }
  func.func @transform_5(%arg0: i32) -> (i32, i32) {
    %c0_i32 = arith.constant 0 : i32
    %c0_i32_0 = arith.constant 0 : i32
    %c0_i32_1 = arith.constant 0 : i32
    return %c0_i32, %c0_i32_0 : i32, i32
  }
  func.func @transform_6(%arg0: i32) -> (i32, i32) {
    %c0_i32 = arith.constant 0 : i32
    %c0_i32_0 = arith.constant 0 : i32
    %c0_i32_1 = arith.constant 0 : i32
    return %c0_i32, %c0_i32_0 : i32, i32
  }
  func.func @transform_7(%arg0: i32) -> (i32, i32) {
    %c0_i32 = arith.constant 0 : i32
    %c0_i32_0 = arith.constant 0 : i32
    return %arg0, %c0_i32 : i32, i32
  }
}

</mosaic_0001>

<llo_original>
// kernel: tpu_custom_call.1
$region0: #{tpu_custom_call.1}
  #allocation0 [shape = 'u32[]', space=smem, size = 0x4, offset = 0x4, fixed_abs, tag = 'smem constant byte address 0x4 - core index']
  #allocation1 [shape = 'u32[144,128]{1,0:T(1,128)}', space=vmem, size = 0x12000, scoped, tag = 'internal scratch']
  %s0 = inlined_call_operand.hbm [shape: f32[8,128], index: 0, kind: input, shape index: {}]
  %s1 = inlined_call_operand.hbm [shape: f32[16,128], index: 1, kind: output, shape index: {}]
  %s2 = sld [smem:[#allocation0]]
  $region41: #{tpu_custom_call.1} parent=0
    _
  %s4 = ssub.s32 1, %s2
  %s5 = scalar_select 0, %s4, %s2
  $region1: #{tpu_custom_call.1} parent=0
    #allocation2 [shape = 'u8[4096]{0}', space=vmem, size = 0x1000, scoped, tag = 'input window, operand 0, single buffered']
    #allocation3 [shape = 's32[2]{0}', space=sflag, size = 0x8, scoped, tag = 'scoped memory for tpu_custom_call.1']
    #allocation4 [shape = 's32[2]{0}', space=sflag, size = 0x8, scoped, tag = 'scoped memory for tpu_custom_call.1']
    #allocation5 [shape = 'u8[8192]{0}', space=vmem, size = 0x2000, scoped, tag = 'output window, operand 0']
    %6 = vsyncpa [#allocation3], 0
    %7 = vsyncpa [#allocation4], 0
    %s8 = scalar_lea.sflag [#allocation4], 1
    %9 = vsyncpa %s8, 0
    loop: start=0, step=1, limit=4
    $region2: #{tpu_custom_call.1} parent=1 // loop_pre_header
      _
    $region3: #{tpu_custom_call.1} parent=1 // loop_header
      %s11 = sphi 0, %s15
      %p12 = scmp.ge.s32.totalorder %s11, 4
      %s19 = sphi 0, %s19
      %s21 = sphi 0, %s19
      %s22 = sphi 0, %s21
      %s36 = sphi 0, %s22
      %s42 = sphi 0, %s44
      %s45 = sphi 0, %s42
      %s46 = sphi 0, %s45
      %s62 = sphi 0, %s46
    $region4: #{tpu_custom_call.1} parent=1 // loop_header_branch
      %14 = sbr.rel (%p12) target = $region8
    $region5: #{tpu_custom_call.1} parent=1 // loop_body
      %s16 = ssub.s32 %s11, 1
      %s17 = ssub.s32 %s11, 2
      %s18 = sadd.s32 %s11, 1
      %s20 = sadd.s32 %s19, 1
      %p23 = scmp.eq.s32.totalorder %s11, 1
      %p24 = scmp.ne.s32.totalorder %s19, %s21
      %p25 = scmp.eq.s32.totalorder %s11, 0
      %p26 = por %p24, %p25
      %p27 = scmp.ne.s32.totalorder %s19, %s21
      %p28 = scmp.eq.s32.totalorder %s16, 1
      %p29 = por %p27, %p28
      %p30 = scmp.ne.s32.totalorder %s21, %s22
      %p31 = scmp.eq.s32.totalorder %s16, 0
      %p32 = por %p30, %p31
      %p33 = scmp.ne.s32.totalorder %s21, %s22
      %p34 = scmp.eq.s32.totalorder %s17, 1
      %p35 = por %p33, %p34
      %p37 = scmp.ne.s32.totalorder %s22, %s36
      %p38 = scmp.eq.s32.totalorder %s17, 0
      %p39 = por %p37, %p38
      %s40 = ssub.s32 %s11, %s18
      %p41 = scmp.eq.s32.totalorder %s40, 0
      %s43 = sadd.s32 %s42, 1
      %s44 = scalar_select %p41, %s42, %s43
      %p47 = pneg %p41
      %p48 = scmp.eq.s32.totalorder %s11, 1
      %p49 = por %p47, %p48
      %p50 = scmp.ne.s32.totalorder %s42, %s45
      %p51 = scmp.eq.s32.totalorder %s11, 0
      %p52 = por %p50, %p51
      %p53 = scmp.ne.s32.totalorder %s42, %s45
      %p54 = scmp.eq.s32.totalorder %s16, 1
      %p55 = por %p53, %p54
      %p56 = scmp.ne.s32.totalorder %s45, %s46
      %p57 = scmp.eq.s32.totalorder %s16, 0
      %p58 = por %p56, %p57
      %p59 = scmp.ne.s32.totalorder %s45, %s46
      %p60 = scmp.eq.s32.totalorder %s17, 1
      %p61 = por %p59, %p60
      %p63 = scmp.ne.s32.totalorder %s46, %s62
      %p64 = scmp.eq.s32.totalorder %s17, 0
      %p65 = por %p63, %p64
      %p66 = scmp.le.s32.totalorder 1, %s11
      %p67 = scmp.lt.s32.totalorder %s11, 3
      %p68 = pnand %p66, %p67
      %p69 = pneg %p68
      // Predicated region
      $region9: #{tpu_custom_call.1} parent=5 // pred_check
        _
      $region10: #{tpu_custom_call.1} parent=5 // pred_check_branch
        %71 = sbr.rel (%p68) target = $region12
      $region11: #{tpu_custom_call.1} parent=5 // pred_region
        %s72 = ssub.s32 %s11, 1
        // Predicated region
        $region13: #{tpu_custom_call.1} parent=11 // pred_check
          %p73 = pneg %p32
        $region14: #{tpu_custom_call.1} parent=11 // pred_check_branch
          %75 = sbr.rel (%p73) target = $region16
        $region15: #{tpu_custom_call.1} parent=11 // pred_region
          %s77 = ssub.s32 128, 128
          %78 = vsyncadd [#allocation3], %s77
          %s80 = sshll.u32 [#allocation2], 4
          %s81 = int_to_ptr.vmem [resolvable:$true] %s80
          %83 = dma.hbm_to_vmem [thread:$0]  %s0, 128, %s81, [#allocation3]
        $region16: #{tpu_custom_call.1} parent=11 // pred_fallthru
          _
      $region12: #{tpu_custom_call.1} parent=5 // pred_fallthru
        _
      %p84 = scmp.lt.s32.totalorder %s11, 2
      // Predicated region
      $region17: #{tpu_custom_call.1} parent=5 // pred_check
        %p85 = pneg %p84
      $region18: #{tpu_custom_call.1} parent=5 // pred_check_branch
        %87 = sbr.rel (%p85) target = $region20
      $region19: #{tpu_custom_call.1} parent=5 // pred_region
        _
      $region20: #{tpu_custom_call.1} parent=5 // pred_fallthru
        _
      %p88 = scmp.le.s32.totalorder 1, %s11
      %p89 = scmp.lt.s32.totalorder %s11, 3
      %p90 = pnand %p88, %p89
      %p91 = pneg %p90
      // Predicated region
      $region21: #{tpu_custom_call.1} parent=5 // pred_check
        _
      $region22: #{tpu_custom_call.1} parent=5 // pred_check_branch
        %93 = sbr.rel (%p90) target = $region24
      $region23: #{tpu_custom_call.1} parent=5 // pred_region
        %s94 = ssub.s32 %s11, 1
        // Predicated region
        $region25: #{tpu_custom_call.1} parent=23 // pred_check
          %p95 = pneg %p32
        $region26: #{tpu_custom_call.1} parent=23 // pred_check_branch
          %97 = sbr.rel (%p95) target = $region28
        $region27: #{tpu_custom_call.1} parent=23 // pred_region
          %98 = dma.done [#allocation3], 128
        $region28: #{tpu_custom_call.1} parent=23 // pred_fallthru
          _
        %p99 = pneg %p32
        %p100 = pneg %p29
        %p101 = pneg %p58
        %p102 = pneg %p55
        %s103 = sand.u32 %s45, 1
        %s104 = scalar_lea.sflag [#allocation4], %s103
        %s105 = sand.u32 %s45, 1
        %s106 = smul.addr %s105, 8
        %s107 = scalar_lea.vmem [#allocation5], %s106
        %v108 = vld [vmem:[#allocation2] sm:$0xff]
        %v109 = vadd.f32 %v108, 1.0
        %110 = vst [vmem:[%s107] sm:$0xff] %v109
        %s111 = sand.u32 %s45, 1
        %s112 = scalar_lea.sflag [#allocation4], %s111
        %s113 = sand.u32 %s45, 1
        %s114 = smul.addr %s113, 8
        %s115 = scalar_lea.vmem [#allocation5], %s114
        // Predicated region
        $region29: #{tpu_custom_call.1} parent=23 // pred_check
          %p116 = pneg %p55
        $region30: #{tpu_custom_call.1} parent=23 // pred_check_branch
          %118 = sbr.rel (%p116) target = $region32
        $region31: #{tpu_custom_call.1} parent=23 // pred_region
          %s120 = ssub.s32 128, 128
          %121 = vsyncadd %s112, %s120
          %s122 = smul.addr %s16, 128
          %s123 = scalar_lea.hbm %s1, %s122
          %s125 = sshll.u32 %s115, 4
          %s126 = int_to_ptr.vmem [resolvable:$true] %s125
          %128 = dma.vmem_to_hbm [thread:$0]  %s126, 128, %s123, %s112
        $region32: #{tpu_custom_call.1} parent=23 // pred_fallthru
          _
      $region24: #{tpu_custom_call.1} parent=5 // pred_fallthru
        _
      %p129 = scmp.le.s32.totalorder 2, %s11
      // Predicated region
      $region33: #{tpu_custom_call.1} parent=5 // pred_check
        %p130 = pneg %p129
      $region34: #{tpu_custom_call.1} parent=5 // pred_check_branch
        %132 = sbr.rel (%p130) target = $region36
      $region35: #{tpu_custom_call.1} parent=5 // pred_region
        %s133 = ssub.s32 %s11, 2
        // Predicated region
        $region37: #{tpu_custom_call.1} parent=35 // pred_check
          %p134 = pneg %p61
        $region38: #{tpu_custom_call.1} parent=35 // pred_check_branch
          %136 = sbr.rel (%p134) target = $region40
        $region39: #{tpu_custom_call.1} parent=35 // pred_region
          %s137 = sand.u32 %s46, 1
          %s138 = scalar_lea.sflag [#allocation4], %s137
          %s139 = sand.u32 %s46, 1
          %s140 = smul.addr %s139, 8
          %s141 = scalar_lea.vmem [#allocation5], %s140
          %142 = dma.done %s138, 128
        $region40: #{tpu_custom_call.1} parent=35 // pred_fallthru
          _
      $region36: #{tpu_custom_call.1} parent=5 // pred_fallthru
        _
    $region6: #{tpu_custom_call.1} parent=1 // loop_footer
      %s15 = sadd.s32 1, %s11
    $region7: #{tpu_custom_call.1} parent=1 // loop_footer_branch
      %10 = sbr.rel target = $region3
    $region8: #{tpu_custom_call.1} parent=1 // loop_exit
      _
    %143 = vsyncpa [#allocation3], 1
    %s144 = scalar_lea.sflag [#allocation3], 1
    %145 = vsyncpa %s144, 1
    %146 = vsyncpa [#allocation4], 1
    %s147 = scalar_lea.sflag [#allocation4], 1
    %148 = vsyncpa %s147, 1

// kernel: adapter_autoencoder.1
$region0: #{adapter_autoencoder.1}
  #allocation0 [shape = 'u32[]', space=smem, size = 0x4, offset = 0x4, fixed_abs, tag = 'smem constant byte address 0x4 - core index']
  #allocation1 [shape = 'u32[144,128]{1,0:T(1,128)}', space=vmem, size = 0x12000, scoped, tag = 'internal scratch']
  %s0 = inlined_call_operand.vmem [shape: f32[24,32], index: 0, kind: input, shape index: {}]
  %s1 = inlined_call_operand.vmem [shape: f32[32,64], index: 1, kind: input, shape index: {}]
  %s2 = inlined_call_operand.vmem [shape: f32[1,64], index: 2, kind: input, shape index: {}]
  %s3 = inlined_call_operand.vmem [shape: f32[64,64], index: 3, kind: input, shape index: {}]
  %s4 = inlined_call_operand.vmem [shape: f32[1,64], index: 4, kind: input, shape index: {}]
  %s5 = inlined_call_operand.vmem [shape: f32[64,32], index: 5, kind: input, shape index: {}]
  %s6 = inlined_call_operand.vmem [shape: f32[1,32], index: 6, kind: input, shape index: {}]
  %s7 = inlined_call_operand.hbm [shape: f32[24,32], index: 7, kind: output, shape index: {}]
  %s8 = sld [smem:[#allocation0]]
  $region61: #{adapter_autoencoder.1} parent=0
    _
  %s10 = ssub.s32 1, %s8
  %s11 = scalar_select 0, %s10, %s8
  $region1: #{adapter_autoencoder.1} parent=0
    #allocation2 [shape = 'u8[8192]{0}', space=vmem, size = 0x2000, scoped, tag = 'output window, operand 0']
    #allocation3 [shape = 's32[2]{0}', space=sflag, size = 0x8, scoped, tag = 'scoped memory for adapter_autoencoder.1']
    %12 = vsyncpa [#allocation3], 0
    %s13 = scalar_lea.sflag [#allocation3], 1
    %14 = vsyncpa %s13, 0
    loop: start=0, step=1, limit=5
    $region2: #{adapter_autoencoder.1} parent=1 // loop_pre_header
      _
    $region3: #{adapter_autoencoder.1} parent=1 // loop_header
      %s16 = sphi 0, %s20
      %p17 = scmp.ge.s32.totalorder %s16, 5
      %s26 = sphi 0, %s28
      %s29 = sphi 0, %s26
      %s30 = sphi 0, %s29
      %s46 = sphi 0, %s30
      %s50 = sphi 0, %s50
      %s52 = sphi 0, %s50
      %s53 = sphi 0, %s52
      %s67 = sphi 0, %s53
      %s71 = sphi 0, %s71
      %s73 = sphi 0, %s71
      %s74 = sphi 0, %s73
      %s88 = sphi 0, %s74
      %s92 = sphi 0, %s92
      %s94 = sphi 0, %s92
      %s95 = sphi 0, %s94
      %s109 = sphi 0, %s95
      %s113 = sphi 0, %s113
      %s115 = sphi 0, %s113
      %s116 = sphi 0, %s115
      %s130 = sphi 0, %s116
      %s134 = sphi 0, %s134
      %s136 = sphi 0, %s134
      %s137 = sphi 0, %s136
      %s151 = sphi 0, %s137
      %s155 = sphi 0, %s155
      %s157 = sphi 0, %s155
      %s158 = sphi 0, %s157
      %s172 = sphi 0, %s158
      %s178 = sphi 0, %s180
      %s181 = sphi 0, %s178
      %s182 = sphi 0, %s181
      %s198 = sphi 0, %s182
    $region4: #{adapter_autoencoder.1} parent=1 // loop_header_branch
      %19 = sbr.rel (%p17) target = $region8
    $region5: #{adapter_autoencoder.1} parent=1 // loop_body
      %s21 = ssub.s32 %s16, 1
      %s22 = ssub.s32 %s16, 2
      %s23 = sadd.s32 %s16, 1
      %s24 = ssub.s32 %s16, %s23
      %p25 = scmp.eq.s32.totalorder %s24, 0
      %s27 = sadd.s32 %s26, 1
      %s28 = scalar_select %p25, %s26, %s27
      %p31 = pneg %p25
      %p32 = scmp.eq.s32.totalorder %s16, 2
      %p33 = por %p31, %p32
      %p34 = scmp.ne.s32.totalorder %s26, %s29
      %p35 = scmp.eq.s32.totalorder %s16, 0
      %p36 = por %p34, %p35
      %p37 = scmp.ne.s32.totalorder %s26, %s29
      %p38 = scmp.eq.s32.totalorder %s21, 2
      %p39 = por %p37, %p38
      %p40 = scmp.ne.s32.totalorder %s29, %s30
      %p41 = scmp.eq.s32.totalorder %s21, 0
      %p42 = por %p40, %p41
      %p43 = scmp.ne.s32.totalorder %s29, %s30
      %p44 = scmp.eq.s32.totalorder %s22, 2
      %p45 = por %p43, %p44
      %p47 = scmp.ne.s32.totalorder %s30, %s46
      %p48 = scmp.eq.s32.totalorder %s22, 0
      %p49 = por %p47, %p48
      %s51 = sadd.s32 %s50, 1
      %p54 = scmp.eq.s32.totalorder %s16, 2
      %p55 = scmp.ne.s32.totalorder %s50, %s52
      %p56 = scmp.eq.s32.totalorder %s16, 0
      %p57 = por %p55, %p56
      %p58 = scmp.ne.s32.totalorder %s50, %s52
      %p59 = scmp.eq.s32.totalorder %s21, 2
      %p60 = por %p58, %p59
      %p61 = scmp.ne.s32.totalorder %s52, %s53
      %p62 = scmp.eq.s32.totalorder %s21, 0
      %p63 = por %p61, %p62
      %p64 = scmp.ne.s32.totalorder %s52, %s53
      %p65 = scmp.eq.s32.totalorder %s22, 2
      %p66 = por %p64, %p65
      %p68 = scmp.ne.s32.totalorder %s53, %s67
      %p69 = scmp.eq.s32.totalorder %s22, 0
      %p70 = por %p68, %p69
      %s72 = sadd.s32 %s71, 1
      %p75 = scmp.eq.s32.totalorder %s16, 2
      %p76 = scmp.ne.s32.totalorder %s71, %s73
      %p77 = scmp.eq.s32.totalorder %s16, 0
      %p78 = por %p76, %p77
      %p79 = scmp.ne.s32.totalorder %s71, %s73
      %p80 = scmp.eq.s32.totalorder %s21, 2
      %p81 = por %p79, %p80
      %p82 = scmp.ne.s32.totalorder %s73, %s74
      %p83 = scmp.eq.s32.totalorder %s21, 0
      %p84 = por %p82, %p83
      %p85 = scmp.ne.s32.totalorder %s73, %s74
      %p86 = scmp.eq.s32.totalorder %s22, 2
      %p87 = por %p85, %p86
      %p89 = scmp.ne.s32.totalorder %s74, %s88
      %p90 = scmp.eq.s32.totalorder %s22, 0
      %p91 = por %p89, %p90
      %s93 = sadd.s32 %s92, 1
      %p96 = scmp.eq.s32.totalorder %s16, 2
      %p97 = scmp.ne.s32.totalorder %s92, %s94
      %p98 = scmp.eq.s32.totalorder %s16, 0
      %p99 = por %p97, %p98
      %p100 = scmp.ne.s32.totalorder %s92, %s94
      %p101 = scmp.eq.s32.totalorder %s21, 2
      %p102 = por %p100, %p101
      %p103 = scmp.ne.s32.totalorder %s94, %s95
      %p104 = scmp.eq.s32.totalorder %s21, 0
      %p105 = por %p103, %p104
      %p106 = scmp.ne.s32.totalorder %s94, %s95
      %p107 = scmp.eq.s32.totalorder %s22, 2
      %p108 = por %p106, %p107
      %p110 = scmp.ne.s32.totalorder %s95, %s109
      %p111 = scmp.eq.s32.totalorder %s22, 0
      %p112 = por %p110, %p111
      %s114 = sadd.s32 %s113, 1
      %p117 = scmp.eq.s32.totalorder %s16, 2
      %p118 = scmp.ne.s32.totalorder %s113, %s115
      %p119 = scmp.eq.s32.totalorder %s16, 0
      %p120 = por %p118, %p119
      %p121 = scmp.ne.s32.totalorder %s113, %s115
      %p122 = scmp.eq.s32.totalorder %s21, 2
      %p123 = por %p121, %p122
      %p124 = scmp.ne.s32.totalorder %s115, %s116
      %p125 = scmp.eq.s32.totalorder %s21, 0
      %p126 = por %p124, %p125
      %p127 = scmp.ne.s32.totalorder %s115, %s116
      %p128 = scmp.eq.s32.totalorder %s22, 2
      %p129 = por %p127, %p128
      %p131 = scmp.ne.s32.totalorder %s116, %s130
      %p132 = scmp.eq.s32.totalorder %s22, 0
      %p133 = por %p131, %p132
      %s135 = sadd.s32 %s134, 1
      %p138 = scmp.eq.s32.totalorder %s16, 2
      %p139 = scmp.ne.s32.totalorder %s134, %s136
      %p140 = scmp.eq.s32.totalorder %s16, 0
      %p141 = por %p139, %p140
      %p142 = scmp.ne.s32.totalorder %s134, %s136
      %p143 = scmp.eq.s32.totalorder %s21, 2
      %p144 = por %p142, %p143
      %p145 = scmp.ne.s32.totalorder %s136, %s137
      %p146 = scmp.eq.s32.totalorder %s21, 0
      %p147 = por %p145, %p146
      %p148 = scmp.ne.s32.totalorder %s136, %s137
      %p149 = scmp.eq.s32.totalorder %s22, 2
      %p150 = por %p148, %p149
      %p152 = scmp.ne.s32.totalorder %s137, %s151
      %p153 = scmp.eq.s32.totalorder %s22, 0
      %p154 = por %p152, %p153
      %s156 = sadd.s32 %s155, 1
      %p159 = scmp.eq.s32.totalorder %s16, 2
      %p160 = scmp.ne.s32.totalorder %s155, %s157
      %p161 = scmp.eq.s32.totalorder %s16, 0
      %p162 = por %p160, %p161
      %p163 = scmp.ne.s32.totalorder %s155, %s157
      %p164 = scmp.eq.s32.totalorder %s21, 2
      %p165 = por %p163, %p164
      %p166 = scmp.ne.s32.totalorder %s157, %s158
      %p167 = scmp.eq.s32.totalorder %s21, 0
      %p168 = por %p166, %p167
      %p169 = scmp.ne.s32.totalorder %s157, %s158
      %p170 = scmp.eq.s32.totalorder %s22, 2
      %p171 = por %p169, %p170
      %p173 = scmp.ne.s32.totalorder %s158, %s172
      %p174 = scmp.eq.s32.totalorder %s22, 0
      %p175 = por %p173, %p174
      %s176 = ssub.s32 %s16, %s23
      %p177 = scmp.eq.s32.totalorder %s176, 0
      %s179 = sadd.s32 %s178, 1
      %s180 = scalar_select %p177, %s178, %s179
      %p183 = pneg %p177
      %p184 = scmp.eq.s32.totalorder %s16, 2
      %p185 = por %p183, %p184
      %p186 = scmp.ne.s32.totalorder %s178, %s181
      %p187 = scmp.eq.s32.totalorder %s16, 0
      %p188 = por %p186, %p187
      %p189 = scmp.ne.s32.totalorder %s178, %s181
      %p190 = scmp.eq.s32.totalorder %s21, 2
      %p191 = por %p189, %p190
      %p192 = scmp.ne.s32.totalorder %s181, %s182
      %p193 = scmp.eq.s32.totalorder %s21, 0
      %p194 = por %p192, %p193
      %p195 = scmp.ne.s32.totalorder %s181, %s182
      %p196 = scmp.eq.s32.totalorder %s22, 2
      %p197 = por %p195, %p196
      %p199 = scmp.ne.s32.totalorder %s182, %s198
      %p200 = scmp.eq.s32.totalorder %s22, 0
      %p201 = por %p199, %p200
      %p202 = scmp.le.s32.totalorder 1, %s16
      %p203 = scmp.lt.s32.totalorder %s16, 4
      %p204 = pnand %p202, %p203
      %p205 = pneg %p204
      // Predicated region
      $region9: #{adapter_autoencoder.1} parent=5 // pred_check
        _
      $region10: #{adapter_autoencoder.1} parent=5 // pred_check_branch
        %207 = sbr.rel (%p204) target = $region12
      $region11: #{adapter_autoencoder.1} parent=5 // pred_region
        %s208 = ssub.s32 %s16, 1
        // Predicated region
        $region13: #{adapter_autoencoder.1} parent=11 // pred_check
          %p209 = pneg %p63
        $region14: #{adapter_autoencoder.1} parent=11 // pred_check_branch
          %211 = sbr.rel (%p209) target = $region16
        $region15: #{adapter_autoencoder.1} parent=11 // pred_region
          _
        $region16: #{adapter_autoencoder.1} parent=11 // pred_fallthru
          _
        // Predicated region
        $region17: #{adapter_autoencoder.1} parent=11 // pred_check
          %p212 = pneg %p84
        $region18: #{adapter_autoencoder.1} parent=11 // pred_check_branch
          %214 = sbr.rel (%p212) target = $region20
        $region19: #{adapter_autoencoder.1} parent=11 // pred_region
          _
        $region20: #{adapter_autoencoder.1} parent=11 // pred_fallthru
          _
        // Predicated region
        $region21: #{adapter_autoencoder.1} parent=11 // pred_check
          %p215 = pneg %p105
        $region22: #{adapter_autoencoder.1} parent=11 // pred_check_branch
          %217 = sbr.rel (%p215) target = $region24
        $region23: #{adapter_autoencoder.1} parent=11 // pred_region
          _
        $region24: #{adapter_autoencoder.1} parent=11 // pred_fallthru
          _
        // Predicated region
        $region25: #{adapter_autoencoder.1} parent=11 // pred_check
          %p218 = pneg %p126
        $region26: #{adapter_autoencoder.1} parent=11 // pred_check_branch
          %220 = sbr.rel (%p218) target = $region28
        $region27: #{adapter_autoencoder.1} parent=11 // pred_region
          _
        $region28: #{adapter_autoencoder.1} parent=11 // pred_fallthru
          _
        // Predicated region
        $region29: #{adapter_autoencoder.1} parent=11 // pred_check
          %p221 = pneg %p147
        $region30: #{adapter_autoencoder.1} parent=11 // pred_check_branch
          %223 = sbr.rel (%p221) target = $region32
        $region31: #{adapter_autoencoder.1} parent=11 // pred_region
          _
        $region32: #{adapter_autoencoder.1} parent=11 // pred_fallthru
          _
        // Predicated region
        $region33: #{adapter_autoencoder.1} parent=11 // pred_check
          %p224 = pneg %p168
        $region34: #{adapter_autoencoder.1} parent=11 // pred_check_branch
          %226 = sbr.rel (%p224) target = $region36
        $region35: #{adapter_autoencoder.1} parent=11 // pred_region
          _
        $region36: #{adapter_autoencoder.1} parent=11 // pred_fallthru
          _
      $region12: #{adapter_autoencoder.1} parent=5 // pred_fallthru
        _
      %p227 = scmp.lt.s32.totalorder %s16, 3
      // Predicated region
      $region37: #{adapter_autoencoder.1} parent=5 // pred_check
        %p228 = pneg %p227
      $region38: #{adapter_autoencoder.1} parent=5 // pred_check_branch
        %230 = sbr.rel (%p228) target = $region40
      $region39: #{adapter_autoencoder.1} parent=5 // pred_region
        // Predicated region
        $region41: #{adapter_autoencoder.1} parent=39 // pred_check
          %p231 = pneg %p36
        $region42: #{adapter_autoencoder.1} parent=39 // pred_check_branch
          %233 = sbr.rel (%p231) target = $region44
        $region43: #{adapter_autoencoder.1} parent=39 // pred_region
          %p234 = scmp.lt.s32.totalorder %s16, 2
          %s235 = scalar_select %p234, %s16, 2
          %s236 = smul.addr %s235, 8
          %s237 = scalar_lea.vmem %s0, %s236
        $region44: #{adapter_autoencoder.1} parent=39 // pred_fallthru
          _
      $region40: #{adapter_autoencoder.1} parent=5 // pred_fallthru
        _
      %p238 = scmp.le.s32.totalorder 1, %s16
      %p239 = scmp.lt.s32.totalorder %s16, 4
      %p240 = pnand %p238, %p239
      %p241 = pneg %p240
      // Predicated region
      $region45: #{adapter_autoencoder.1} parent=5 // pred_check
        _
      $region46: #{adapter_autoencoder.1} parent=5 // pred_check_branch
        %243 = sbr.rel (%p240) target = $region48
      $region47: #{adapter_autoencoder.1} parent=5 // pred_region
        %s244 = ssub.s32 %s16, 1
        %p245 = scmp.lt.s32.totalorder %s21, 2
        %s246 = scalar_select %p245, %s21, 2
        %s247 = smul.addr %s246, 8
        %s248 = scalar_lea.vmem %s0, %s247
        %p249 = pneg %p42
        %p250 = pneg %p39
        %p251 = pneg %p63
        %p252 = pneg %p60
        %p253 = pneg %p84
        %p254 = pneg %p81
        %p255 = pneg %p105
        %p256 = pneg %p102
        %p257 = pneg %p126
        %p258 = pneg %p123
        %p259 = pneg %p147
        %p260 = pneg %p144
        %p261 = pneg %p168
        %p262 = pneg %p165
        %p263 = pneg %p194
        %p264 = pneg %p191
        %s265 = sand.u32 %s181, 1
        %s266 = scalar_lea.sflag [#allocation3], %s265
        %s267 = sand.u32 %s181, 1
        %s268 = smul.addr %s267, 8
        %s269 = scalar_lea.vmem [#allocation2], %s268
        %p270 = scmp.lt.s32.totalorder %s21, 2
        %s271 = scalar_select %p270, %s21, 2
        %s272 = smul.addr %s271, 8
        %s273 = scalar_lea.vmem %s0, %s272
        %v274 = vld [vmem:[%s273] sm:$0xff]
        %v275 = vld [vmem:[%s1] sm:$0xff]
        %v276 = vld [vmem:[%s1 + $0x8] sm:$0xff]
        %v277 = vld [vmem:[%s1 + $0x10] sm:$0xff]
        %v278 = vld [vmem:[%s1 + $0x18] sm:$0xff]
        %v279 = vld [vmem:[%s2] sm:$0x1]
        %v281 = vlaneseq
        %v282 = vshrl.u32 %v281, 7
        %v283 = vsub.s32 0, %v282
        %v284 = vrot.slane %v279, %v283
        %vm286 = vcmask 261120
        %v288 = vsel %vm286, %v274, 0
        %290 = vmatprep.subr.mxu0 0.0
        %291 = vmatpush1.msra.mxu0 %v275
        %292 = vmatprep.subr.mxu0 0.0
        %293 = vmatpush1.msra.mxu0 %v276
        %294 = vmatprep.subr.mxu0 0.0
        %295 = vmatpush1.msra.mxu0 %v277
        %296 = vmatprep.subr.mxu0 0.0
        %297 = vmatpush1.msra.mxu0 %v278
        %298 = vmatprep.subr.mxu0 0.0
        %299 = vmatpush1.msra.mxu0 0.0
        %300 = vmatprep.subr.mxu0 0.0
        %301 = vmatpush1.msra.mxu0 0.0
        %302 = vmatprep.subr.mxu0 0.0
        %303 = vmatpush1.msra.mxu0 0.0
        %304 = vmatprep.subr.mxu0 0.0
        %305 = vmatpush1.msra.mxu0 0.0
        %306 = vmatprep.subr.mxu0 0.0
        %307 = vmatpush1.msra.mxu0 0.0
        %308 = vmatprep.subr.mxu0 0.0
        %309 = vmatpush1.msra.mxu0 0.0
        %310 = vmatprep.subr.mxu0 0.0
        %311 = vmatpush1.msra.mxu0 0.0
        %312 = vmatprep.subr.mxu0 0.0
        %313 = vmatpush1.msra.mxu0 0.0
        %314 = vmatprep.subr.mxu0 0.0
        %315 = vmatpush1.msra.mxu0 0.0
        %316 = vmatprep.subr.mxu0 0.0
        %317 = vmatpush1.msra.mxu0 0.0
        %318 = vmatprep.subr.mxu0 0.0
        %319 = vmatpush1.msra.mxu0 0.0
        %320 = vmatprep.subr.mxu0 0.0
        %321 = vmatpush1.msra.mxu0 0.0
        %322 = vmatprep.subr.mxu0 0.0
        %323 = vmatpush1.msra.mxu0 0.0
        %324 = vmatprep.subr.mxu0 0.0
        %325 = vmatpush1.msra.mxu0 0.0
        %326 = vmatprep.subr.mxu0 0.0
        %327 = vmatpush1.msra.mxu0 0.0
        %328 = vmatprep.subr.mxu0 0.0
        %329 = vmatpush1.msra.mxu0 0.0
        %330 = vmatprep.subr.mxu0 0.0
        %331 = vmatpush1.msra.mxu0 0.0
        %332 = vmatprep.subr.mxu0 0.0
        %333 = vmatpush1.msra.mxu0 0.0
        %334 = vmatprep.subr.mxu0 0.0
        %335 = vmatpush1.msra.mxu0 0.0
        %336 = vmatprep.subr.mxu0 0.0
        %337 = vmatpush1.msra.mxu0 0.0
        %338 = vmatprep.subr.mxu0 0.0
        %339 = vmatpush1.msra.mxu0 0.0
        %340 = vmatprep.subr.mxu0 0.0
        %341 = vmatpush1.msra.mxu0 0.0
        %342 = vmatprep.subr.mxu0 0.0
        %343 = vmatpush1.msra.mxu0 0.0
        %344 = vmatprep.subr.mxu0 0.0
        %345 = vmatpush1.msra.mxu0 0.0
        %346 = vmatprep.subr.mxu0 0.0
        %347 = vmatpush1.msra.mxu0 0.0
        %348 = vmatprep.subr.mxu0 0.0
        %349 = vmatpush1.msra.mxu0 0.0
        %350 = vmatprep.subr.mxu0 0.0
        %351 = vmatpush1.msra.mxu0 0.0
        %352 = vmatprep.subr.mxu0 0.0
        %353 = vmatpush1.msra.mxu0 0.0
        %354 = vmatprep.mubr.f32.mxu0 0.0
        %355 = vmatmul.mubr.f32.gmra.mrb[0].mxu0 %v288
        %v356 = vpop.f32.mrb[0].mxu0
        %v357 = vadd.f32 %v284, %v356
        %v358 = vpop.f32.mrb[0].mxu0
        %359 = vdwg.mxu0
        %v360 = vmax.f32 %v357, 0.0
        %v361 = vld [vmem:[%s3] sm:$0xff]
        %v362 = vld [vmem:[%s3 + $0x8] sm:$0xff]
        %v363 = vld [vmem:[%s3 + $0x10] sm:$0xff]
        %v364 = vld [vmem:[%s3 + $0x18] sm:$0xff]
        %v365 = vld [vmem:[%s3 + $0x20] sm:$0xff]
        %v366 = vld [vmem:[%s3 + $0x28] sm:$0xff]
        %v367 = vld [vmem:[%s3 + $0x30] sm:$0xff]
        %v368 = vld [vmem:[%s3 + $0x38] sm:$0xff]
        %v369 = vld [vmem:[%s4] sm:$0x1]
        %v371 = vlaneseq
        %v372 = vshrl.u32 %v371, 7
        %v373 = vsub.s32 0, %v372
        %v374 = vrot.slane %v369, %v373
        %vm376 = vcmask 523264
        %v378 = vsel %vm376, %v360, 0
        %380 = vmatprep.subr.mxu0 0.0
        %381 = vmatpush1.msra.mxu0 %v361
        %382 = vmatprep.subr.mxu0 0.0
        %383 = vmatpush1.msra.mxu0 %v362
        %384 = vmatprep.subr.mxu0 0.0
        %385 = vmatpush1.msra.mxu0 %v363
        %386 = vmatprep.subr.mxu0 0.0
        %387 = vmatpush1.msra.mxu0 %v364
        %388 = vmatprep.subr.mxu0 0.0
        %389 = vmatpush1.msra.mxu0 %v365
        %390 = vmatprep.subr.mxu0 0.0
        %391 = vmatpush1.msra.mxu0 %v366
        %392 = vmatprep.subr.mxu0 0.0
        %393 = vmatpush1.msra.mxu0 %v367
        %394 = vmatprep.subr.mxu0 0.0
        %395 = vmatpush1.msra.mxu0 %v368
        %396 = vmatprep.subr.mxu0 0.0
        %397 = vmatpush1.msra.mxu0 0.0
        %398 = vmatprep.subr.mxu0 0.0
        %399 = vmatpush1.msra.mxu0 0.0
        %400 = vmatprep.subr.mxu0 0.0
        %401 = vmatpush1.msra.mxu0 0.0
        %402 = vmatprep.subr.mxu0 0.0
        %403 = vmatpush1.msra.mxu0 0.0
        %404 = vmatprep.subr.mxu0 0.0
        %405 = vmatpush1.msra.mxu0 0.0
        %406 = vmatprep.subr.mxu0 0.0
        %407 = vmatpush1.msra.mxu0 0.0
        %408 = vmatprep.subr.mxu0 0.0
        %409 = vmatpush1.msra.mxu0 0.0
        %410 = vmatprep.subr.mxu0 0.0
        %411 = vmatpush1.msra.mxu0 0.0
        %412 = vmatprep.subr.mxu0 0.0
        %413 = vmatpush1.msra.mxu0 0.0
        %414 = vmatprep.subr.mxu0 0.0
        %415 = vmatpush1.msra.mxu0 0.0
        %416 = vmatprep.subr.mxu0 0.0
        %417 = vmatpush1.msra.mxu0 0.0
        %418 = vmatprep.subr.mxu0 0.0
        %419 = vmatpush1.msra.mxu0 0.0
        %420 = vmatprep.subr.mxu0 0.0
        %421 = vmatpush1.msra.mxu0 0.0
        %422 = vmatprep.subr.mxu0 0.0
        %423 = vmatpush1.msra.mxu0 0.0
        %424 = vmatprep.subr.mxu0 0.0
        %425 = vmatpush1.msra.mxu0 0.0
        %426 = vmatprep.subr.mxu0 0.0
        %427 = vmatpush1.msra.mxu0 0.0
        %428 = vmatprep.subr.mxu0 0.0
        %429 = vmatpush1.msra.mxu0 0.0
        %430 = vmatprep.subr.mxu0 0.0
        %431 = vmatpush1.msra.mxu0 0.0
        %432 = vmatprep.subr.mxu0 0.0
        %433 = vmatpush1.msra.mxu0 0.0
        %434 = vmatprep.subr.mxu0 0.0
        %435 = vmatpush1.msra.mxu0 0.0
        %436 = vmatprep.subr.mxu0 0.0
        %437 = vmatpush1.msra.mxu0 0.0
        %438 = vmatprep.subr.mxu0 0.0
        %439 = vmatpush1.msra.mxu0 0.0
        %440 = vmatprep.subr.mxu0 0.0
        %441 = vmatpush1.msra.mxu0 0.0
        %442 = vmatprep.subr.mxu0 0.0
        %443 = vmatpush1.msra.mxu0 0.0
        %444 = vmatprep.mubr.f32.mxu0 0.0
        %445 = vmatmul.mubr.f32.gmra.mrb[0].mxu0 %v378
        %v446 = vpop.f32.mrb[0].mxu0
        %v447 = vadd.f32 %v374, %v446
        %v448 = vpop.f32.mrb[0].mxu0
        %449 = vdwg.mxu0
        %v450 = vmax.f32 %v447, 0.0
        %v451 = vld [vmem:[%s5] sm:$0xff]
        %v452 = vld [vmem:[%s5 + $0x8] sm:$0xff]
        %v453 = vld [vmem:[%s5 + $0x10] sm:$0xff]
        %v454 = vld [vmem:[%s5 + $0x18] sm:$0xff]
        %v455 = vld [vmem:[%s5 + $0x20] sm:$0xff]
        %v456 = vld [vmem:[%s5 + $0x28] sm:$0xff]
        %v457 = vld [vmem:[%s5 + $0x30] sm:$0xff]
        %v458 = vld [vmem:[%s5 + $0x38] sm:$0xff]
        %v459 = vld [vmem:[%s6] sm:$0x1]
        %v461 = vlaneseq
        %v462 = vshrl.u32 %v461, 7
        %v463 = vsub.s32 0, %v462
        %v464 = vrot.slane %v459, %v463
        %v467 = vsel %vm376, %v450, 0
        %469 = vmatprep.subr.mxu0 0.0
        %470 = vmatpush1.msra.mxu0 %v451
        %471 = vmatprep.subr.mxu0 0.0
        %472 = vmatpush1.msra.mxu0 %v452
        %473 = vmatprep.subr.mxu0 0.0
        %474 = vmatpush1.msra.mxu0 %v453
        %475 = vmatprep.subr.mxu0 0.0
        %476 = vmatpush1.msra.mxu0 %v454
        %477 = vmatprep.subr.mxu0 0.0
        %478 = vmatpush1.msra.mxu0 %v455
        %479 = vmatprep.subr.mxu0 0.0
        %480 = vmatpush1.msra.mxu0 %v456
        %481 = vmatprep.subr.mxu0 0.0
        %482 = vmatpush1.msra.mxu0 %v457
        %483 = vmatprep.subr.mxu0 0.0
        %484 = vmatpush1.msra.mxu0 %v458
        %485 = vmatprep.subr.mxu0 0.0
        %486 = vmatpush1.msra.mxu0 0.0
        %487 = vmatprep.subr.mxu0 0.0
        %488 = vmatpush1.msra.mxu0 0.0
        %489 = vmatprep.subr.mxu0 0.0
        %490 = vmatpush1.msra.mxu0 0.0
        %491 = vmatprep.subr.mxu0 0.0
        %492 = vmatpush1.msra.mxu0 0.0
        %493 = vmatprep.subr.mxu0 0.0
        %494 = vmatpush1.msra.mxu0 0.0
        %495 = vmatprep.subr.mxu0 0.0
        %496 = vmatpush1.msra.mxu0 0.0
        %497 = vmatprep.subr.mxu0 0.0
        %498 = vmatpush1.msra.mxu0 0.0
        %499 = vmatprep.subr.mxu0 0.0
        %500 = vmatpush1.msra.mxu0 0.0
        %501 = vmatprep.subr.mxu0 0.0
        %502 = vmatpush1.msra.mxu0 0.0
        %503 = vmatprep.subr.mxu0 0.0
        %504 = vmatpush1.msra.mxu0 0.0
        %505 = vmatprep.subr.mxu0 0.0
        %506 = vmatpush1.msra.mxu0 0.0
        %507 = vmatprep.subr.mxu0 0.0
        %508 = vmatpush1.msra.mxu0 0.0
        %509 = vmatprep.subr.mxu0 0.0
        %510 = vmatpush1.msra.mxu0 0.0
        %511 = vmatprep.subr.mxu0 0.0
        %512 = vmatpush1.msra.mxu0 0.0
        %513 = vmatprep.subr.mxu0 0.0
        %514 = vmatpush1.msra.mxu0 0.0
        %515 = vmatprep.subr.mxu0 0.0
        %516 = vmatpush1.msra.mxu0 0.0
        %517 = vmatprep.subr.mxu0 0.0
        %518 = vmatpush1.msra.mxu0 0.0
        %519 = vmatprep.subr.mxu0 0.0
        %520 = vmatpush1.msra.mxu0 0.0
        %521 = vmatprep.subr.mxu0 0.0
        %522 = vmatpush1.msra.mxu0 0.0
        %523 = vmatprep.subr.mxu0 0.0
        %524 = vmatpush1.msra.mxu0 0.0
        %525 = vmatprep.subr.mxu0 0.0
        %526 = vmatpush1.msra.mxu0 0.0
        %527 = vmatprep.subr.mxu0 0.0
        %528 = vmatpush1.msra.mxu0 0.0
        %529 = vmatprep.subr.mxu0 0.0
        %530 = vmatpush1.msra.mxu0 0.0
        %531 = vmatprep.subr.mxu0 0.0
        %532 = vmatpush1.msra.mxu0 0.0
        %533 = vmatprep.mubr.f32.mxu0 0.0
        %534 = vmatmul.mubr.f32.gmra.mrb[0].mxu0 %v467
        %v535 = vpop.f32.mrb[0].mxu0
        %v536 = vadd.f32 %v464, %v535
        %v537 = vpop.f32.mrb[0].mxu0
        %538 = vdwg.mxu0
        %539 = vst.msk [vmem:[%s269] sm:$0xff] %vm286, %v536
        %s540 = sand.u32 %s181, 1
        %s541 = scalar_lea.sflag [#allocation3], %s540
        %s542 = sand.u32 %s181, 1
        %s543 = smul.addr %s542, 8
        %s544 = scalar_lea.vmem [#allocation2], %s543
        // Predicated region
        $region49: #{adapter_autoencoder.1} parent=47 // pred_check
          %p545 = pneg %p191
        $region50: #{adapter_autoencoder.1} parent=47 // pred_check_branch
          %547 = sbr.rel (%p545) target = $region52
        $region51: #{adapter_autoencoder.1} parent=47 // pred_region
          %s549 = ssub.s32 128, 128
          %550 = vsyncadd %s541, %s549
          %s551 = smul.addr %s21, 128
          %s552 = scalar_lea.hbm %s7, %s551
          %s554 = sshll.u32 %s544, 4
          %s555 = int_to_ptr.vmem [resolvable:$true] %s554
          %557 = dma.vmem_to_hbm [thread:$0]  %s555, 128, %s552, %s541
        $region52: #{adapter_autoencoder.1} parent=47 // pred_fallthru
          _
      $region48: #{adapter_autoencoder.1} parent=5 // pred_fallthru
        _
      %p558 = scmp.le.s32.totalorder 2, %s16
      // Predicated region
      $region53: #{adapter_autoencoder.1} parent=5 // pred_check
        %p559 = pneg %p558
      $region54: #{adapter_autoencoder.1} parent=5 // pred_check_branch
        %561 = sbr.rel (%p559) target = $region56
      $region55: #{adapter_autoencoder.1} parent=5 // pred_region
        %s562 = ssub.s32 %s16, 2
        // Predicated region
        $region57: #{adapter_autoencoder.1} parent=55 // pred_check
          %p563 = pneg %p197
        $region58: #{adapter_autoencoder.1} parent=55 // pred_check_branch
          %565 = sbr.rel (%p563) target = $region60
        $region59: #{adapter_autoencoder.1} parent=55 // pred_region
          %s566 = sand.u32 %s182, 1
          %s567 = scalar_lea.sflag [#allocation3], %s566
          %s568 = sand.u32 %s182, 1
          %s569 = smul.addr %s568, 8
          %s570 = scalar_lea.vmem [#allocation2], %s569
          %571 = dma.done %s567, 128
        $region60: #{adapter_autoencoder.1} parent=55 // pred_fallthru
          _
      $region56: #{adapter_autoencoder.1} parent=5 // pred_fallthru
        _
    $region6: #{adapter_autoencoder.1} parent=1 // loop_footer
      %s20 = sadd.s32 1, %s16
    $region7: #{adapter_autoencoder.1} parent=1 // loop_footer_branch
      %15 = sbr.rel target = $region3
    $region8: #{adapter_autoencoder.1} parent=1 // loop_exit
      _
    %572 = vsyncpa [#allocation3], 1
    %s573 = scalar_lea.sflag [#allocation3], 1
    %574 = vsyncpa %s573, 1

</llo_original>
